<compile_context>
chip_gen: v7x
topology: tpu7x:2x2x1
jax: 0.10.0
libtpu: 0.0.40
codegen_flags: <defaults>
</compile_context>

<pallas_src>
import functools

import jax
import jax.numpy as jnp
from jax.experimental import pallas as pl
from jax.experimental.pallas import tpu as pltpu

IN_FEATURES = 23
HIDDEN1 = 32
HIDDEN2 = 16
N_ACTIONS = 4          # Breakout: env.single_action_space.n == 4


def _round_up(n, m):
    return ((n + m - 1) // m) * m


def _qnet_kernel(x_ref, w1_ref, b1_ref, w2_ref, b2_ref, w3_ref, b3_ref, o_ref):
    # One batch tile per grid step; weights/biases are tiny full-array blocks.
    cdt = w1_ref.dtype  # weight/x storage dtype (f32 or bf16); accumulation stays f32
    x = x_ref[...]
    h1 = jnp.dot(x, w1_ref[...], preferred_element_type=jnp.float32) + b1_ref[...]
    h1 = jnp.maximum(h1, 0.0)
    h2 = jnp.dot(h1.astype(cdt), w2_ref[...], preferred_element_type=jnp.float32) + b2_ref[...]
    h2 = jnp.maximum(h2, 0.0)
    o_ref[...] = (
        jnp.dot(h2.astype(cdt), w3_ref[...], preferred_element_type=jnp.float32) + b3_ref[...]
    ).astype(o_ref.dtype)


def prepare_params(params, compute_dtype=jnp.float32):
    """One-time parameter prep. Cache the result; do NOT call per forward step.

    compute_dtype=jnp.bfloat16 halves weight/x HBM bytes for large-batch inference
    (MXU accumulation stays f32; bias-add / ReLU stay f32 on the VPU).
    """
    return {
        "w1": params["w1"].astype(compute_dtype),
        "w2": params["w2"].astype(compute_dtype),
        "w3": params["w3"].astype(compute_dtype),
        "b1": params["b1"].reshape(1, HIDDEN1).astype(jnp.float32),
        "b2": params["b2"].reshape(1, HIDDEN2).astype(jnp.float32),
        "b3": params["b3"].reshape(1, N_ACTIONS).astype(jnp.float32),
    }


@functools.partial(jax.jit, static_argnames=("tb_max",))
def qnetwork_forward(x, prep, *, tb_max=512):
    """x: (B, 23) feature batch. prep: cached output of prepare_params()."""
    B = x.shape[0]
    TB = min(tb_max, _round_up(B, 8))       # batch tile (sublane-aligned, capped)
    Bp = _round_up(B, TB)                   # pad batch up to a whole number of tiles

    xp = x.astype(prep["w1"].dtype)
    if Bp != B:
        xp = jnp.pad(xp, ((0, Bp - B), (0, 0)))  # zero rows; sliced off below

    def full(shape):  # whole-array block, identical for every grid step
        return pl.BlockSpec(shape, lambda i: (0, 0))

    out = pl.pallas_call(
        _qnet_kernel,
        out_shape=jax.ShapeDtypeStruct((Bp, N_ACTIONS), jnp.float32),
        grid=(Bp // TB,),
        in_specs=[
            pl.BlockSpec((TB, IN_FEATURES), lambda i: (i, 0)),   # x: tiled over batch
            full((IN_FEATURES, HIDDEN1)),                        # w1
            full((1, HIDDEN1)),                                  # b1
            full((HIDDEN1, HIDDEN2)),                            # w2
            full((1, HIDDEN2)),                                  # b2
            full((HIDDEN2, N_ACTIONS)),                          # w3
            full((1, N_ACTIONS)),                                # b3
        ],
        out_specs=pl.BlockSpec((TB, N_ACTIONS), lambda i: (i, 0)),
        compiler_params=pltpu.CompilerParams(
            # Batch tiles are independent -> v7x shards them across both TensorCores.
            dimension_semantics=("parallel",),
        ),
    )(xp, prep["w1"], prep["b1"], prep["w2"], prep["b2"], prep["w3"], prep["b3"])

    return out[:B]  # drop padded rows; output is already exactly N_ACTIONS wide


def reference_forward(x, p):
    h1 = jnp.maximum(x @ p["w1"] + p["b1"], 0.0)
    h2 = jnp.maximum(h1 @ p["w2"] + p["b2"], 0.0)
    return h2 @ p["w3"] + p["b3"]


def qnetwork_apply(x, params, prep, *, min_pallas_batch=1024):
    """Routing helper: tiny batches are faster on the plain fused-XLA path."""
    if x.shape[0] < min_pallas_batch:
        return reference_forward(x, params)
    return qnetwork_forward(x, prep)


def init_params(key):
    """Deterministic init mirroring the nn.Linear shapes, stored as (in, out)."""
    ks = jax.random.split(key, 6)

    def lin(kw, kb, fan_in, fan_out):
        bound = 1.0 / jnp.sqrt(float(fan_in))
        w = jax.random.uniform(kw, (fan_in, fan_out), jnp.float32, -bound, bound)
        b = jax.random.uniform(kb, (fan_out,), jnp.float32, -bound, bound)
        return w, b

    w1, b1 = lin(ks[0], ks[1], IN_FEATURES, HIDDEN1)
    w2, b2 = lin(ks[2], ks[3], HIDDEN1, HIDDEN2)
    w3, b3 = lin(ks[4], ks[5], HIDDEN2, N_ACTIONS)
    return {"w1": w1, "b1": b1, "w2": w2, "b2": b2, "w3": w3, "b3": b3}


if __name__ == "__main__":
    key = jax.random.PRNGKey(0)
    k_params, k_x, k_x2 = jax.random.split(key, 3)

    params = init_params(k_params)
    prep = prepare_params(params)          # prepared ONCE, reused every forward

    # Small batch of pre-extracted 23-dim state features (what process_element() yields).
    B = 8
    x = jax.random.uniform(k_x, (B, IN_FEATURES), jnp.float32, 0.0, 1.0)

    y = qnetwork_forward(x, prep)
    y = jax.block_until_ready(y)
    y_ref = reference_forward(x, params)
    assert y.shape == (B, N_ACTIONS)
    assert jnp.allclose(y, y_ref, atol=1e-4, rtol=1e-4), "mismatch vs JAX reference (B=8)"

    # Exercise the multi-tile grid + ragged-batch padding path at small scale.
    B2 = 20
    x2 = jax.random.uniform(k_x2, (B2, IN_FEATURES), jnp.float32, 0.0, 1.0)
    y2 = jax.block_until_ready(qnetwork_forward(x2, prep, tb_max=8))  # grid=(3,), 4 padded rows
    y2_ref = reference_forward(x2, params)
    assert y2.shape == (B2, N_ACTIONS)
    assert jnp.allclose(y2, y2_ref, atol=1e-4, rtol=1e-4), "mismatch vs JAX reference (B=20)"

    print("KERNEL_OK")
</pallas_src>

<mosaic_0001>
module attributes {stable_mosaic.version = 11 : i64} {
  func.func @_qnet_kernel(%arg0: i32, %arg1: memref<8x23xf32, #tpu.memory_space<vmem>>, %arg2: memref<23x32xf32, #tpu.memory_space<vmem>>, %arg3: memref<1x32xf32, #tpu.memory_space<vmem>>, %arg4: memref<32x16xf32, #tpu.memory_space<vmem>>, %arg5: memref<1x16xf32, #tpu.memory_space<vmem>>, %arg6: memref<16x4xf32, #tpu.memory_space<vmem>>, %arg7: memref<1x4xf32, #tpu.memory_space<vmem>>, %arg8: memref<8x4xf32, #tpu.memory_space<vmem>>) attributes {dimension_semantics = [#tpu.dimension_semantics<parallel>], iteration_bounds = array<i64: 1>, scalar_prefetch = 0 : i64, scratch_operands = 0 : i64, tpu.core_type = #tpu.core_type<tc>, window_params = [{transform_indices = @transform_0, window_bounds = array<i64: 8, 23>}, {pipeline_mode = #tpu.pipeline_mode<synchronous>, transform_indices = @transform_1, window_bounds = array<i64: 23, 32>}, {pipeline_mode = #tpu.pipeline_mode<synchronous>, transform_indices = @transform_2, window_bounds = array<i64: 1, 32>}, {pipeline_mode = #tpu.pipeline_mode<synchronous>, transform_indices = @transform_3, window_bounds = array<i64: 32, 16>}, {pipeline_mode = #tpu.pipeline_mode<synchronous>, transform_indices = @transform_4, window_bounds = array<i64: 1, 16>}, {pipeline_mode = #tpu.pipeline_mode<synchronous>, transform_indices = @transform_5, window_bounds = array<i64: 16, 4>}, {pipeline_mode = #tpu.pipeline_mode<synchronous>, transform_indices = @transform_6, window_bounds = array<i64: 1, 4>}, {transform_indices = @transform_7, window_bounds = array<i64: 8, 4>}]} {
    %c0 = arith.constant 0 : index
    %c0_0 = arith.constant 0 : index
    %0 = vector.load %arg1[%c0, %c0_0] : memref<8x23xf32, #tpu.memory_space<vmem>>, vector<8x23xf32>
    %c0_1 = arith.constant 0 : index
    %c0_2 = arith.constant 0 : index
    %1 = vector.load %arg2[%c0_1, %c0_2] : memref<23x32xf32, #tpu.memory_space<vmem>>, vector<23x32xf32>
    %cst = arith.constant dense<0.000000e+00> : vector<8x32xf32>
    %2 = tpu.matmul %0, %1, %cst {dimension_numbers = #tpu.dot_dimension_numbers<[1], [0], [0], [1], [0, 0, 1, 1], [], []>} : vector<8x23xf32>, vector<23x32xf32>, vector<8x32xf32> -> vector<8x32xf32>
    %c0_3 = arith.constant 0 : index
    %c0_4 = arith.constant 0 : index
    %3 = vector.load %arg3[%c0_3, %c0_4] : memref<1x32xf32, #tpu.memory_space<vmem>>, vector<1x32xf32>
    %4 = vector.broadcast %3 : vector<1x32xf32> to vector<8x32xf32>
    %5 = arith.addf %2, %4 : vector<8x32xf32>
    %cst_5 = arith.constant 0.000000e+00 : f32
    %6 = vector.broadcast %cst_5 : f32 to vector<8x32xf32>
    %7 = arith.maximumf %5, %6 : vector<8x32xf32>
    %c0_6 = arith.constant 0 : index
    %c0_7 = arith.constant 0 : index
    %8 = vector.load %arg4[%c0_6, %c0_7] : memref<32x16xf32, #tpu.memory_space<vmem>>, vector<32x16xf32>
    %cst_8 = arith.constant dense<0.000000e+00> : vector<8x16xf32>
    %9 = tpu.matmul %7, %8, %cst_8 {dimension_numbers = #tpu.dot_dimension_numbers<[1], [0], [0], [1], [0, 0, 1, 1], [], []>} : vector<8x32xf32>, vector<32x16xf32>, vector<8x16xf32> -> vector<8x16xf32>
    %c0_9 = arith.constant 0 : index
    %c0_10 = arith.constant 0 : index
    %10 = vector.load %arg5[%c0_9, %c0_10] : memref<1x16xf32, #tpu.memory_space<vmem>>, vector<1x16xf32>
    %11 = vector.broadcast %10 : vector<1x16xf32> to vector<8x16xf32>
    %12 = arith.addf %9, %11 : vector<8x16xf32>
    %cst_11 = arith.constant 0.000000e+00 : f32
    %13 = vector.broadcast %cst_11 : f32 to vector<8x16xf32>
    %14 = arith.maximumf %12, %13 : vector<8x16xf32>
    %c0_12 = arith.constant 0 : index
    %c0_13 = arith.constant 0 : index
    %15 = vector.load %arg6[%c0_12, %c0_13] : memref<16x4xf32, #tpu.memory_space<vmem>>, vector<16x4xf32>
    %cst_14 = arith.constant dense<0.000000e+00> : vector<8x4xf32>
    %16 = tpu.matmul %14, %15, %cst_14 {dimension_numbers = #tpu.dot_dimension_numbers<[1], [0], [0], [1], [0, 0, 1, 1], [], []>} : vector<8x16xf32>, vector<16x4xf32>, vector<8x4xf32> -> vector<8x4xf32>
    %c0_15 = arith.constant 0 : index
    %c0_16 = arith.constant 0 : index
    %17 = vector.load %arg7[%c0_15, %c0_16] : memref<1x4xf32, #tpu.memory_space<vmem>>, vector<1x4xf32>
    %18 = vector.broadcast %17 : vector<1x4xf32> to vector<8x4xf32>
    %19 = arith.addf %16, %18 : vector<8x4xf32>
    %c0_17 = arith.constant 0 : index
    %c0_18 = arith.constant 0 : index
    %20 = vector.load %arg8[%c0_17, %c0_18] : memref<8x4xf32, #tpu.memory_space<vmem>>, vector<8x4xf32>
    tpu.vector_store %arg8[%c0_17, %c0_18], %19 {strides = array<i32>} : memref<8x4xf32, #tpu.memory_space<vmem>>, vector<8x4xf32>,
    return
  }
  func.func @transform_0(%arg0: i32) -> (i32, i32) {
    %c0_i32 = arith.constant 0 : i32
    %c0_i32_0 = arith.constant 0 : i32
    return %arg0, %c0_i32 : i32, i32
  }
  func.func @transform_1(%arg0: i32) -> (i32, i32) {
    %c0_i32 = arith.constant 0 : i32
    %c0_i32_0 = arith.constant 0 : i32
    %c0_i32_1 = arith.constant 0 : i32
    return %c0_i32, %c0_i32_0 : i32, i32
  }
  func.func @transform_2(%arg0: i32) -> (i32, i32) {
    %c0_i32 = arith.constant 0 : i32
    %c0_i32_0 = arith.constant 0 : i32
    %c0_i32_1 = arith.constant 0 : i32
    return %c0_i32, %c0_i32_0 : i32, i32
  }
  func.func @transform_3(%arg0: i32) -> (i32, i32) {
    %c0_i32 = arith.constant 0 : i32
    %c0_i32_0 = arith.constant 0 : i32
    %c0_i32_1 = arith.constant 0 : i32
    return %c0_i32, %c0_i32_0 : i32, i32
  }
  func.func @transform_4(%arg0: i32) -> (i32, i32) {
    %c0_i32 = arith.constant 0 : i32
    %c0_i32_0 = arith.constant 0 : i32
    %c0_i32_1 = arith.constant 0 : i32
    return %c0_i32, %c0_i32_0 : i32, i32
  }
  func.func @transform_5(%arg0: i32) -> (i32, i32) {
    %c0_i32 = arith.constant 0 : i32
    %c0_i32_0 = arith.constant 0 : i32
    %c0_i32_1 = arith.constant 0 : i32
    return %c0_i32, %c0_i32_0 : i32, i32
  }
  func.func @transform_6(%arg0: i32) -> (i32, i32) {
    %c0_i32 = arith.constant 0 : i32
    %c0_i32_0 = arith.constant 0 : i32
    %c0_i32_1 = arith.constant 0 : i32
    return %c0_i32, %c0_i32_0 : i32, i32
  }
  func.func @transform_7(%arg0: i32) -> (i32, i32) {
    %c0_i32 = arith.constant 0 : i32
    %c0_i32_0 = arith.constant 0 : i32
    return %arg0, %c0_i32 : i32, i32
  }
}

</mosaic_0001>

<llo_original>
// kernel: qnetwork_forward.1
$region0: #{qnetwork_forward.1}
  #allocation0 [shape = 'u32[]', space=smem, size = 0x4, offset = 0x4, fixed_abs, tag = 'smem constant byte address 0x4 - core index']
  #allocation1 [shape = 'u32[144,128]{1,0:T(1,128)}', space=vmem, size = 0x12000, scoped, tag = 'internal scratch']
  %s0 = inlined_call_operand.vmem [shape: f32[8,23], index: 0, kind: input, shape index: {}]
  %s1 = inlined_call_operand.vmem [shape: f32[23,32], index: 1, kind: input, shape index: {}]
  %s2 = inlined_call_operand.vmem [shape: f32[1,32], index: 2, kind: input, shape index: {}]
  %s3 = inlined_call_operand.vmem [shape: f32[32,16], index: 3, kind: input, shape index: {}]
  %s4 = inlined_call_operand.vmem [shape: f32[1,16], index: 4, kind: input, shape index: {}]
  %s5 = inlined_call_operand.vmem [shape: f32[16,4], index: 5, kind: input, shape index: {}]
  %s6 = inlined_call_operand.vmem [shape: f32[1,4], index: 6, kind: input, shape index: {}]
  %s7 = inlined_call_operand.vmem [shape: f32[8,4], index: 7, kind: output, shape index: {}]
  %s8 = sld [smem:[#allocation0]]
  $region38: #{qnetwork_forward.1} parent=0
    _
  %s10 = ssub.s32 1, %s8
  %s11 = scalar_select 0, %s10, %s8
  // Predicated region
  $region2: #{qnetwork_forward.1} parent=0 // pred_check
    _
  $region3: #{qnetwork_forward.1} parent=0 // pred_check_branch
    %13 = sbr.rel (0) target = $region5
  $region4: #{qnetwork_forward.1} parent=0 // pred_region
    _
  $region5: #{qnetwork_forward.1} parent=0 // pred_fallthru
    _
  // Predicated region
  $region6: #{qnetwork_forward.1} parent=0 // pred_check
    _
  $region7: #{qnetwork_forward.1} parent=0 // pred_check_branch
    %15 = sbr.rel (0) target = $region9
  $region8: #{qnetwork_forward.1} parent=0 // pred_region
    _
  $region9: #{qnetwork_forward.1} parent=0 // pred_fallthru
    _
  // Predicated region
  $region10: #{qnetwork_forward.1} parent=0 // pred_check
    _
  $region11: #{qnetwork_forward.1} parent=0 // pred_check_branch
    %17 = sbr.rel (0) target = $region13
  $region12: #{qnetwork_forward.1} parent=0 // pred_region
    _
  $region13: #{qnetwork_forward.1} parent=0 // pred_fallthru
    _
  // Predicated region
  $region14: #{qnetwork_forward.1} parent=0 // pred_check
    _
  $region15: #{qnetwork_forward.1} parent=0 // pred_check_branch
    %19 = sbr.rel (0) target = $region17
  $region16: #{qnetwork_forward.1} parent=0 // pred_region
    _
  $region17: #{qnetwork_forward.1} parent=0 // pred_fallthru
    _
  // Predicated region
  $region18: #{qnetwork_forward.1} parent=0 // pred_check
    _
  $region19: #{qnetwork_forward.1} parent=0 // pred_check_branch
    %21 = sbr.rel (0) target = $region21
  $region20: #{qnetwork_forward.1} parent=0 // pred_region
    _
  $region21: #{qnetwork_forward.1} parent=0 // pred_fallthru
    _
  // Predicated region
  $region22: #{qnetwork_forward.1} parent=0 // pred_check
    _
  $region23: #{qnetwork_forward.1} parent=0 // pred_check_branch
    %23 = sbr.rel (0) target = $region25
  $region24: #{qnetwork_forward.1} parent=0 // pred_region
    _
  $region25: #{qnetwork_forward.1} parent=0 // pred_fallthru
    _
  // Predicated region
  $region26: #{qnetwork_forward.1} parent=0 // pred_check
    _
  $region27: #{qnetwork_forward.1} parent=0 // pred_check_branch
    %25 = sbr.rel (0) target = $region29
  $region28: #{qnetwork_forward.1} parent=0 // pred_region
    _
  $region29: #{qnetwork_forward.1} parent=0 // pred_fallthru
    _
  %v26 = vld [vmem:[%s0] sm:$0xff]
  %v27 = vld [vmem:[%s1] sm:$0xff]
  %v28 = vld [vmem:[%s1 + $0x8] sm:$0xff]
  %v29 = vld [vmem:[%s1 + $0x10] sm:$0x7f]
  %v30 = vld [vmem:[%s2] sm:$0x1]
  %v32 = vlaneseq
  %v33 = vshrl.u32 %v32, 7
  %v34 = vsub.s32 0, %v33
  %v35 = vrot.slane %v30, %v34
  %vm37 = vcmask 187392
  %v39 = vsel %vm37, %v26, 0
  %vm41 = vcmask 1046528
  %v43 = vsel %vm41, %v29, 0
  %45 = vmatprep.subr.mxu0 0.0
  %46 = vmatpush1.msra.mxu0 %v27
  %47 = vmatprep.subr.mxu0 0.0
  %48 = vmatpush1.msra.mxu0 %v28
  %49 = vmatprep.subr.mxu0 0.0
  %50 = vmatpush1.msra.mxu0 %v43
  %51 = vmatprep.subr.mxu0 0.0
  %52 = vmatpush1.msra.mxu0 0.0
  %53 = vmatprep.subr.mxu0 0.0
  %54 = vmatpush1.msra.mxu0 0.0
  %55 = vmatprep.subr.mxu0 0.0
  %56 = vmatpush1.msra.mxu0 0.0
  %57 = vmatprep.subr.mxu0 0.0
  %58 = vmatpush1.msra.mxu0 0.0
  %59 = vmatprep.subr.mxu0 0.0
  %60 = vmatpush1.msra.mxu0 0.0
  %61 = vmatprep.subr.mxu0 0.0
  %62 = vmatpush1.msra.mxu0 0.0
  %63 = vmatprep.subr.mxu0 0.0
  %64 = vmatpush1.msra.mxu0 0.0
  %65 = vmatprep.subr.mxu0 0.0
  %66 = vmatpush1.msra.mxu0 0.0
  %67 = vmatprep.subr.mxu0 0.0
  %68 = vmatpush1.msra.mxu0 0.0
  %69 = vmatprep.subr.mxu0 0.0
  %70 = vmatpush1.msra.mxu0 0.0
  %71 = vmatprep.subr.mxu0 0.0
  %72 = vmatpush1.msra.mxu0 0.0
  %73 = vmatprep.subr.mxu0 0.0
  %74 = vmatpush1.msra.mxu0 0.0
  %75 = vmatprep.subr.mxu0 0.0
  %76 = vmatpush1.msra.mxu0 0.0
  %77 = vmatprep.subr.mxu0 0.0
  %78 = vmatpush1.msra.mxu0 0.0
  %79 = vmatprep.subr.mxu0 0.0
  %80 = vmatpush1.msra.mxu0 0.0
  %81 = vmatprep.subr.mxu0 0.0
  %82 = vmatpush1.msra.mxu0 0.0
  %83 = vmatprep.subr.mxu0 0.0
  %84 = vmatpush1.msra.mxu0 0.0
  %85 = vmatprep.subr.mxu0 0.0
  %86 = vmatpush1.msra.mxu0 0.0
  %87 = vmatprep.subr.mxu0 0.0
  %88 = vmatpush1.msra.mxu0 0.0
  %89 = vmatprep.subr.mxu0 0.0
  %90 = vmatpush1.msra.mxu0 0.0
  %91 = vmatprep.subr.mxu0 0.0
  %92 = vmatpush1.msra.mxu0 0.0
  %93 = vmatprep.subr.mxu0 0.0
  %94 = vmatpush1.msra.mxu0 0.0
  %95 = vmatprep.subr.mxu0 0.0
  %96 = vmatpush1.msra.mxu0 0.0
  %97 = vmatprep.subr.mxu0 0.0
  %98 = vmatpush1.msra.mxu0 0.0
  %99 = vmatprep.subr.mxu0 0.0
  %100 = vmatpush1.msra.mxu0 0.0
  %101 = vmatprep.subr.mxu0 0.0
  %102 = vmatpush1.msra.mxu0 0.0
  %103 = vmatprep.subr.mxu0 0.0
  %104 = vmatpush1.msra.mxu0 0.0
  %105 = vmatprep.subr.mxu0 0.0
  %106 = vmatpush1.msra.mxu0 0.0
  %107 = vmatprep.subr.mxu0 0.0
  %108 = vmatpush1.msra.mxu0 0.0
  %109 = vmatprep.mubr.f32.mxu0 0.0
  %110 = vmatmul.mubr.f32.gmra.mrb[0].mxu0 %v39
  %v111 = vpop.f32.mrb[0].mxu0
  %v112 = vadd.f32 %v35, %v111
  %v113 = vpop.f32.mrb[0].mxu0
  %114 = vdwg.mxu0
  %v115 = vmax.f32 %v112, 0.0
  %v116 = vld [vmem:[%s3] sm:$0xff]
  %v117 = vld [vmem:[%s3 + $0x8] sm:$0xff]
  %v118 = vld [vmem:[%s3 + $0x10] sm:$0xff]
  %v119 = vld [vmem:[%s3 + $0x18] sm:$0xff]
  %v120 = vld [vmem:[%s4] sm:$0x1]
  %v122 = vlaneseq
  %v123 = vshrl.u32 %v122, 7
  %v124 = vsub.s32 0, %v123
  %v125 = vrot.slane %v120, %v124
  %vm127 = vcmask 261120
  %v129 = vsel %vm127, %v115, 0
  %131 = vmatprep.subr.mxu0 0.0
  %132 = vmatpush1.msra.mxu0 %v116
  %133 = vmatprep.subr.mxu0 0.0
  %134 = vmatpush1.msra.mxu0 %v117
  %135 = vmatprep.subr.mxu0 0.0
  %136 = vmatpush1.msra.mxu0 %v118
  %137 = vmatprep.subr.mxu0 0.0
  %138 = vmatpush1.msra.mxu0 %v119
  %139 = vmatprep.subr.mxu0 0.0
  %140 = vmatpush1.msra.mxu0 0.0
  %141 = vmatprep.subr.mxu0 0.0
  %142 = vmatpush1.msra.mxu0 0.0
  %143 = vmatprep.subr.mxu0 0.0
  %144 = vmatpush1.msra.mxu0 0.0
  %145 = vmatprep.subr.mxu0 0.0
  %146 = vmatpush1.msra.mxu0 0.0
  %147 = vmatprep.subr.mxu0 0.0
  %148 = vmatpush1.msra.mxu0 0.0
  %149 = vmatprep.subr.mxu0 0.0
  %150 = vmatpush1.msra.mxu0 0.0
  %151 = vmatprep.subr.mxu0 0.0
  %152 = vmatpush1.msra.mxu0 0.0
  %153 = vmatprep.subr.mxu0 0.0
  %154 = vmatpush1.msra.mxu0 0.0
  %155 = vmatprep.subr.mxu0 0.0
  %156 = vmatpush1.msra.mxu0 0.0
  %157 = vmatprep.subr.mxu0 0.0
  %158 = vmatpush1.msra.mxu0 0.0
  %159 = vmatprep.subr.mxu0 0.0
  %160 = vmatpush1.msra.mxu0 0.0
  %161 = vmatprep.subr.mxu0 0.0
  %162 = vmatpush1.msra.mxu0 0.0
  %163 = vmatprep.subr.mxu0 0.0
  %164 = vmatpush1.msra.mxu0 0.0
  %165 = vmatprep.subr.mxu0 0.0
  %166 = vmatpush1.msra.mxu0 0.0
  %167 = vmatprep.subr.mxu0 0.0
  %168 = vmatpush1.msra.mxu0 0.0
  %169 = vmatprep.subr.mxu0 0.0
  %170 = vmatpush1.msra.mxu0 0.0
  %171 = vmatprep.subr.mxu0 0.0
  %172 = vmatpush1.msra.mxu0 0.0
  %173 = vmatprep.subr.mxu0 0.0
  %174 = vmatpush1.msra.mxu0 0.0
  %175 = vmatprep.subr.mxu0 0.0
  %176 = vmatpush1.msra.mxu0 0.0
  %177 = vmatprep.subr.mxu0 0.0
  %178 = vmatpush1.msra.mxu0 0.0
  %179 = vmatprep.subr.mxu0 0.0
  %180 = vmatpush1.msra.mxu0 0.0
  %181 = vmatprep.subr.mxu0 0.0
  %182 = vmatpush1.msra.mxu0 0.0
  %183 = vmatprep.subr.mxu0 0.0
  %184 = vmatpush1.msra.mxu0 0.0
  %185 = vmatprep.subr.mxu0 0.0
  %186 = vmatpush1.msra.mxu0 0.0
  %187 = vmatprep.subr.mxu0 0.0
  %188 = vmatpush1.msra.mxu0 0.0
  %189 = vmatprep.subr.mxu0 0.0
  %190 = vmatpush1.msra.mxu0 0.0
  %191 = vmatprep.subr.mxu0 0.0
  %192 = vmatpush1.msra.mxu0 0.0
  %193 = vmatprep.subr.mxu0 0.0
  %194 = vmatpush1.msra.mxu0 0.0
  %195 = vmatprep.mubr.f32.mxu0 0.0
  %196 = vmatmul.mubr.f32.gmra.mrb[0].mxu0 %v129
  %v197 = vpop.f32.mrb[0].mxu0
  %v198 = vadd.f32 %v125, %v197
  %v199 = vpop.f32.mrb[0].mxu0
  %200 = vdwg.mxu0
  %v201 = vmax.f32 %v198, 0.0
  %v202 = vld [vmem:[%s5] sm:$0xff]
  %v203 = vld [vmem:[%s5 + $0x8] sm:$0xff]
  %v204 = vld [vmem:[%s6] sm:$0x1]
  %v206 = vlaneseq
  %v207 = vshrl.u32 %v206, 7
  %v208 = vsub.s32 0, %v207
  %v209 = vrot.slane %v204, %v208
  %vm211 = vcmask 130048
  %v213 = vsel %vm211, %v201, 0
  %215 = vmatprep.subr.mxu0 0.0
  %216 = vmatpush1.msra.mxu0 %v202
  %217 = vmatprep.subr.mxu0 0.0
  %218 = vmatpush1.msra.mxu0 %v203
  %219 = vmatprep.subr.mxu0 0.0
  %220 = vmatpush1.msra.mxu0 0.0
  %221 = vmatprep.subr.mxu0 0.0
  %222 = vmatpush1.msra.mxu0 0.0
  %223 = vmatprep.subr.mxu0 0.0
  %224 = vmatpush1.msra.mxu0 0.0
  %225 = vmatprep.subr.mxu0 0.0
  %226 = vmatpush1.msra.mxu0 0.0
  %227 = vmatprep.subr.mxu0 0.0
  %228 = vmatpush1.msra.mxu0 0.0
  %229 = vmatprep.subr.mxu0 0.0
  %230 = vmatpush1.msra.mxu0 0.0
  %231 = vmatprep.subr.mxu0 0.0
  %232 = vmatpush1.msra.mxu0 0.0
  %233 = vmatprep.subr.mxu0 0.0
  %234 = vmatpush1.msra.mxu0 0.0
  %235 = vmatprep.subr.mxu0 0.0
  %236 = vmatpush1.msra.mxu0 0.0
  %237 = vmatprep.subr.mxu0 0.0
  %238 = vmatpush1.msra.mxu0 0.0
  %239 = vmatprep.subr.mxu0 0.0
  %240 = vmatpush1.msra.mxu0 0.0
  %241 = vmatprep.subr.mxu0 0.0
  %242 = vmatpush1.msra.mxu0 0.0
  %243 = vmatprep.subr.mxu0 0.0
  %244 = vmatpush1.msra.mxu0 0.0
  %245 = vmatprep.subr.mxu0 0.0
  %246 = vmatpush1.msra.mxu0 0.0
  %247 = vmatprep.subr.mxu0 0.0
  %248 = vmatpush1.msra.mxu0 0.0
  %249 = vmatprep.subr.mxu0 0.0
  %250 = vmatpush1.msra.mxu0 0.0
  %251 = vmatprep.subr.mxu0 0.0
  %252 = vmatpush1.msra.mxu0 0.0
  %253 = vmatprep.subr.mxu0 0.0
  %254 = vmatpush1.msra.mxu0 0.0
  %255 = vmatprep.subr.mxu0 0.0
  %256 = vmatpush1.msra.mxu0 0.0
  %257 = vmatprep.subr.mxu0 0.0
  %258 = vmatpush1.msra.mxu0 0.0
  %259 = vmatprep.subr.mxu0 0.0
  %260 = vmatpush1.msra.mxu0 0.0
  %261 = vmatprep.subr.mxu0 0.0
  %262 = vmatpush1.msra.mxu0 0.0
  %263 = vmatprep.subr.mxu0 0.0
  %264 = vmatpush1.msra.mxu0 0.0
  %265 = vmatprep.subr.mxu0 0.0
  %266 = vmatpush1.msra.mxu0 0.0
  %267 = vmatprep.subr.mxu0 0.0
  %268 = vmatpush1.msra.mxu0 0.0
  %269 = vmatprep.subr.mxu0 0.0
  %270 = vmatpush1.msra.mxu0 0.0
  %271 = vmatprep.subr.mxu0 0.0
  %272 = vmatpush1.msra.mxu0 0.0
  %273 = vmatprep.subr.mxu0 0.0
  %274 = vmatpush1.msra.mxu0 0.0
  %275 = vmatprep.subr.mxu0 0.0
  %276 = vmatpush1.msra.mxu0 0.0
  %277 = vmatprep.subr.mxu0 0.0
  %278 = vmatpush1.msra.mxu0 0.0
  %279 = vmatprep.mubr.f32.mxu0 0.0
  %280 = vmatmul.mubr.f32.gmra.mrb[0].mxu0 %v213
  %v281 = vpop.f32.mrb[0].mxu0
  %v282 = vadd.f32 %v209, %v281
  %v283 = vpop.f32.mrb[0].mxu0
  %284 = vdwg.mxu0
  %vm285 = vcmask 31744
  %286 = vst.msk [vmem:[%s7] sm:$0xff] %vm285, %v282
  // Predicated region
  $region30: #{qnetwork_forward.1} parent=0 // pred_check
    _
  $region31: #{qnetwork_forward.1} parent=0 // pred_check_branch
    %288 = sbr.rel (0) target = $region33
  $region32: #{qnetwork_forward.1} parent=0 // pred_region
    _
  $region33: #{qnetwork_forward.1} parent=0 // pred_fallthru
    _
  // Predicated region
  $region34: #{qnetwork_forward.1} parent=0 // pred_check
    _
  $region35: #{qnetwork_forward.1} parent=0 // pred_check_branch
    %290 = sbr.rel (0) target = $region37
  $region36: #{qnetwork_forward.1} parent=0 // pred_region
    _
  $region37: #{qnetwork_forward.1} parent=0 // pred_fallthru
    _

</llo_original>
